<compile_context>
chip_gen: v7x
topology: tpu7x:2x2x1
jax: 0.10.0
libtpu: 0.0.40
codegen_flags: <defaults>
</compile_context>

<pallas_src>
import jax
import jax.numpy as jnp
from jax import lax
from jax.experimental import pallas as pl
from jax.experimental.pallas import tpu as pltpu

# ---------------- config (consistent with Mamba2Mixer.__init__, tp_size == 1) ----------
D_MODEL = 32
D_STATE = 16          # N
D_CONV = 4            # K
EXPAND = 2
N_GROUPS = 1          # G
HEAD_DIM = 16         # P
D_INNER = D_MODEL * EXPAND                                   # 64
NHEADS = D_INNER // HEAD_DIM                                 # 4 (H)
D_IN_PROJ = 2 * D_INNER + 2 * N_GROUPS * D_STATE + NHEADS    # 164
CONV_DIM = D_INNER + 2 * N_GROUPS * D_STATE                  # 96
RMS_EPS = 1e-5
DTYPE = jnp.float32

# TODO(synk): n_groups > 1 needs a head<->group broadcast inside the scan kernel.
assert N_GROUPS == 1


# ------------------------- in_proj (tiled over T, fused z|xbc|dt split) -----------------
def _in_proj_kernel(x_ref, wz_ref, wx_ref, wd_ref, z_ref, xbc_ref, dt_ref):
    f32 = jnp.float32
    x = x_ref[...]
    z_ref[...] = jnp.dot(x, wz_ref[...], preferred_element_type=f32).astype(z_ref.dtype)
    xbc_ref[...] = jnp.dot(x, wx_ref[...], preferred_element_type=f32).astype(xbc_ref.dtype)
    dt_ref[...] = jnp.dot(x, wd_ref[...], preferred_element_type=f32).astype(dt_ref.dtype)


def in_proj_split(x, w_z, w_xbc, w_dt):
    T = x.shape[0]
    tm = T if T <= 1024 else 1024          # big row tiles; T axis 'parallel' for megacore
    return pl.pallas_call(
        _in_proj_kernel,
        out_shape=(jax.ShapeDtypeStruct((T, D_INNER), x.dtype),
                   jax.ShapeDtypeStruct((T, CONV_DIM), x.dtype),
                   jax.ShapeDtypeStruct((T, NHEADS), x.dtype)),
        grid=(pl.cdiv(T, tm),),
        in_specs=[pl.BlockSpec((tm, D_MODEL), lambda i: (i, 0)),
                  pl.BlockSpec((D_MODEL, D_INNER), lambda i: (0, 0)),
                  pl.BlockSpec((D_MODEL, CONV_DIM), lambda i: (0, 0)),
                  pl.BlockSpec((D_MODEL, NHEADS), lambda i: (0, 0))],
        out_specs=(pl.BlockSpec((tm, D_INNER), lambda i: (i, 0)),
                   pl.BlockSpec((tm, CONV_DIM), lambda i: (i, 0)),
                   pl.BlockSpec((tm, NHEADS), lambda i: (i, 0))),
        compiler_params=pltpu.CompilerParams(dimension_semantics=("parallel",)),
    )(x, w_z, w_xbc, w_dt)


# --------------- causal depthwise conv1d + SiLU (in-VMEM pad) + fused x|B|C split -------
def _conv_silu_split_kernel(x_ref, w_ref, b_ref, xo_ref, bo_ref, co_ref, xp_sc):
    f32 = jnp.float32
    L, C = x_ref.shape
    K = w_ref.shape[0]
    pad = xp_sc.shape[0] - L                 # sublane-aligned zero history (>= K-1)
    d_inner = xo_ref.shape[-1]
    n = bo_ref.shape[-1]

    # causal left-pad inside VMEM (zero initial conv state for prefill)
    xp_sc[0:pad, :] = jnp.zeros((pad, C), f32)
    xp_sc[pad:pad + L, :] = x_ref[...].astype(f32)

    acc = jnp.zeros((L, C), f32) + b_ref[...].astype(f32)
    for k in range(K):                       # static unroll over filter taps
        off = pad - (K - 1) + k
        acc = acc + xp_sc[off:off + L, :] * w_ref[k:k + 1, :].astype(f32)
    acc = acc * jax.nn.sigmoid(acc)          # SiLU (apply_silu=True)

    # fused x | B | C split (saves wrapper-side HBM round-trips)
    xo_ref[...] = acc[:, :d_inner].astype(xo_ref.dtype)
    bo_ref[...] = acc[:, d_inner:d_inner + n].astype(bo_ref.dtype)
    co_ref[...] = acc[:, d_inner + n:].astype(co_ref.dtype)


def causal_conv1d_silu_split(x_blc, w_kc, b_1c):
    B, L, C = x_blc.shape
    K = w_kc.shape[0]
    pad = max(8, -(-(K - 1) // 8) * 8)       # >= K-1, multiple of 8
    n = N_GROUPS * D_STATE
    return pl.pallas_call(
        _conv_silu_split_kernel,
        out_shape=(jax.ShapeDtypeStruct((B, L, D_INNER), x_blc.dtype),
                   jax.ShapeDtypeStruct((B, L, n), x_blc.dtype),
                   jax.ShapeDtypeStruct((B, L, n), x_blc.dtype)),
        grid=(B,),
        in_specs=[pl.BlockSpec((pl.Squeezed(), L, C), lambda b: (b, 0, 0)),
                  pl.BlockSpec((K, C), lambda b: (0, 0)),
                  pl.BlockSpec((1, C), lambda b: (0, 0))],
        out_specs=(pl.BlockSpec((pl.Squeezed(), L, D_INNER), lambda b: (b, 0, 0)),
                   pl.BlockSpec((pl.Squeezed(), L, n), lambda b: (b, 0, 0)),
                   pl.BlockSpec((pl.Squeezed(), L, n), lambda b: (b, 0, 0))),
        scratch_shapes=[pltpu.VMEM((L + pad, C), jnp.float32)],
        compiler_params=pltpu.CompilerParams(dimension_semantics=("parallel",)),
    )(x_blc, w_kc, b_1c)


# ------------------------------- chunked SSD selective scan -----------------------------
def _ssd_chunk_scan_kernel(x_ref, z_ref, dt_ref, b_ref, c_ref, adt_ref,
                           y_ref, hT_ref, h_sc):
    # x, z, y : (Q, H*P)   dt: (Q, H)   B, C: (Q, N) (single group)   adt: (3, H)
    # hT      : (H, P, N)  h_sc: VMEM f32 state carried across the chunk grid axis.
    f32 = jnp.float32
    ci = pl.program_id(1)
    Q, d_inner = x_ref.shape
    H = dt_ref.shape[1]
    P = d_inner // H
    NEG = -1e30

    @pl.when(ci == 0)
    def _init():                              # initial_states=None, per sequence
        h_sc[...] = jnp.zeros_like(h_sc)

    x = x_ref[...].astype(f32)
    z = z_ref[...].astype(f32)
    Bg = b_ref[...].astype(f32)               # (Q, N)
    Cg = c_ref[...].astype(f32)               # (Q, N)
    A_row = adt_ref[0:1, :]                   # (1, H)  A < 0
    D_row = adt_ref[1:2, :]                   # (1, H)
    dt_b = adt_ref[2:3, :]                    # (1, H)

    # dt = softplus(dt_raw + dt_bias): overflow-safe, vectorized over the chunk.
    dtr = dt_ref[...].astype(f32) + dt_b
    dt = jnp.maximum(dtr, 0.0) + jnp.log(1.0 + jnp.exp(-jnp.abs(dtr)))     # (Q, H)

    # Inclusive cumulative log-decay per head, computed on the MXU.
    rr = lax.broadcasted_iota(jnp.int32, (Q, Q), 0)       # s
    cc = lax.broadcasted_iota(jnp.int32, (Q, Q), 1)       # u
    causal = cc <= rr
    tril = jnp.where(causal, 1.0, 0.0)
    Lc = jnp.dot(tril, dt * A_row, preferred_element_type=f32)             # (Q, H)
    Lh = Lc.T                                                               # (H, Q)
    dth = dt.T                                                              # (H, Q)

    # gram[s, u] = C_s . B_u (shared across heads, single group)
    gram = lax.dot_general(Cg, Bg, (((1,), (1,)), ((), ())),
                           preferred_element_type=f32)                      # (Q, Q)
    silu_z = z * jax.nn.sigmoid(z)

    for h in range(H):                         # static unroll, small H
        sl = slice(h * P, (h + 1) * P)
        x_h = x[:, sl]                          # (Q, P)
        Lcol = Lc[:, h:h + 1]                   # (Q, 1)
        Lrow = Lh[h:h + 1, :]                   # (1, Q)

        # intra-chunk: causal decay-masked matrix, then MXU matmul against x.
        decay = jnp.exp(jnp.where(causal, Lcol - Lrow, NEG))                # (Q, Q)
        M = gram * decay * dth[h:h + 1, :]                                  # (Q, Q)
        y_h = jnp.dot(M, x_h, preferred_element_type=f32)                   # (Q, P)

        # inter-chunk: contribution of the carried SSM state.
        h_prev = h_sc[h]                        # (P, N)
        y_h += jnp.exp(Lcol) * lax.dot_general(Cg, h_prev, (((1,), (1,)), ((), ())),
                                               preferred_element_type=f32)

        # D skip + z gate (gate-then-normalize, matches mamba_chunk_scan_combined).
        y_h += x_h * D_row[:, h:h + 1]
        y_h *= silu_z[:, sl]
        y_ref[:, sl] = y_h.astype(y_ref.dtype)  # one store per (chunk, head)

        # carry the state to the end of the chunk.
        w_last = jnp.exp(Lcol[Q - 1:Q, :] - Lcol) * dt[:, h:h + 1]          # (Q, 1)
        h_sc[h] = (h_prev * jnp.exp(Lcol[Q - 1:Q, :])
                   + lax.dot_general(x_h * w_last, Bg, (((0,), (0,)), ((), ())),
                                     preferred_element_type=f32))           # (P, N)

    @pl.when(ci == pl.num_programs(1) - 1)
    def _finalize():
        hT_ref[...] = h_sc[...]                 # final per-sequence ssm state (f32)


def ssd_chunk_scan(x, z, dt, Bg, Cg, adt, *, chunk):
    B_, L, d_inner = x.shape
    H = dt.shape[-1]
    N = Bg.shape[-1]
    P = d_inner // H
    n_chunks = L // chunk
    return pl.pallas_call(
        _ssd_chunk_scan_kernel,
        out_shape=(jax.ShapeDtypeStruct((B_, L, d_inner), x.dtype),
                   jax.ShapeDtypeStruct((B_, H, P, N), jnp.float32)),
        grid=(B_, n_chunks),
        in_specs=[pl.BlockSpec((pl.Squeezed(), chunk, d_inner), lambda b, c: (b, c, 0)),
                  pl.BlockSpec((pl.Squeezed(), chunk, d_inner), lambda b, c: (b, c, 0)),
                  pl.BlockSpec((pl.Squeezed(), chunk, H), lambda b, c: (b, c, 0)),
                  pl.BlockSpec((pl.Squeezed(), chunk, N), lambda b, c: (b, c, 0)),
                  pl.BlockSpec((pl.Squeezed(), chunk, N), lambda b, c: (b, c, 0)),
                  pl.BlockSpec((3, H), lambda b, c: (0, 0))],
        out_specs=(pl.BlockSpec((pl.Squeezed(), chunk, d_inner), lambda b, c: (b, c, 0)),
                   pl.BlockSpec((pl.Squeezed(), H, P, N), lambda b, c: (b, 0, 0, 0))),
        scratch_shapes=[pltpu.VMEM((H, P, N), jnp.float32)],
        compiler_params=pltpu.CompilerParams(
            dimension_semantics=("parallel", "arbitrary")),
    )(x, z, dt, Bg, Cg, adt)


# ------------------- grouped RMSNorm fused into out_proj (tiled over T) -----------------
def _norm_out_proj_kernel(y_ref, nw_ref, wo_ref, o_ref):
    f32 = jnp.float32
    y = y_ref[...].astype(f32)                                   # (tm, d_inner)
    # n_groups == 1 -> RMS over the full d_inner per token (RMSNormGated, no gate arg:
    # the z gate was already applied inside the scan).
    var = jnp.mean(y * y, axis=-1, keepdims=True)
    yn = y * lax.rsqrt(var + RMS_EPS) * nw_ref[...].astype(f32)
    o_ref[...] = jnp.dot(yn, wo_ref[...], preferred_element_type=f32).astype(o_ref.dtype)


def norm_out_proj(y, norm_w, w_out):
    T = y.shape[0]
    tm = T if T <= 1024 else 1024
    return pl.pallas_call(
        _norm_out_proj_kernel,
        out_shape=jax.ShapeDtypeStruct((T, D_MODEL), y.dtype),
        grid=(pl.cdiv(T, tm),),
        in_specs=[pl.BlockSpec((tm, D_INNER), lambda i: (i, 0)),
                  pl.BlockSpec((1, D_INNER), lambda i: (0, 0)),
                  pl.BlockSpec((D_INNER, D_MODEL), lambda i: (0, 0))],
        out_specs=pl.BlockSpec((tm, D_MODEL), lambda i: (i, 0)),
        compiler_params=pltpu.CompilerParams(dimension_semantics=("parallel",)),
    )(y, norm_w, w_out)


# ------------------------------- full forward (prefill only) ----------------------------
def mamba2_mixer_forward(hidden_states, params, *, num_prefill_seqs, prefill_len):
    """Prefill path of Mamba2Mixer.forward (num_decodes == 0), equal-length sequences."""
    T, _ = hidden_states.shape
    B, L = num_prefill_seqs, prefill_len
    assert T == B * L

    # TPU-friendly SSD chunk (the module's chunk_size only changes the implementation,
    # not the math; larger chunks move more of the scan onto the MXU).
    Q = min(128, L)
    while Q > 8 and L % Q:
        Q -= 8
    if L % Q:
        Q = L

    # in_proj with the z | xbc | dt split fused into the kernel.
    z, xbc, dt = in_proj_split(hidden_states, params["w_z_t"],
                               params["w_xbc_t"], params["w_dt_t"])

    # causal depthwise conv + SiLU, with the x | B | C split fused in.
    x_f, Bg, Cg = causal_conv1d_silu_split(xbc.reshape(B, L, CONV_DIM),
                                           params["conv_w_t"], params["conv_b"])

    # chunked SSD scan (intra-chunk on the MXU, inter-chunk f32 state recursion).
    y, ssm_final_states = ssd_chunk_scan(x_f,
                                         z.reshape(B, L, D_INNER),
                                         dt.reshape(B, L, NHEADS),
                                         Bg, Cg, params["adt"], chunk=Q)
    # ssm_final_states [B, H, P, N] corresponds to ssm_states[state_indices_p] = ...
    # TODO(synk): decode path (causal_conv1d_update / selective_state_update against
    # cached conv/ssm states) and conv-state cache writeback are not implemented here.

    # gated RMSNorm fused into out_proj.
    out = norm_out_proj(y.reshape(T, D_INNER), params["norm_w"], params["w_out_t"])
    return out, ssm_final_states


# ------------------------------- pure-JAX reference (sequential) ------------------------
def mamba2_reference(hidden_states, params, *, num_prefill_seqs, prefill_len):
    B, L = num_prefill_seqs, prefill_len
    hi = lax.Precision.HIGHEST
    w_in_t = jnp.concatenate([params["w_z_t"], params["w_xbc_t"], params["w_dt_t"]], axis=1)
    zxbcdt = jnp.dot(hidden_states, w_in_t, precision=hi)
    z = zxbcdt[:, :D_INNER].reshape(B, L, NHEADS, HEAD_DIM)
    xbc = zxbcdt[:, D_INNER:D_INNER + CONV_DIM].reshape(B, L, CONV_DIM)
    dt_raw = zxbcdt[:, D_INNER + CONV_DIM:].reshape(B, L, NHEADS)

    xp = jnp.pad(xbc, ((0, 0), (D_CONV - 1, 0), (0, 0)))
    acc = jnp.zeros((B, L, CONV_DIM), jnp.float32) + params["conv_b"][None]
    for k in range(D_CONV):
        acc = acc + xp[:, k:k + L, :] * params["conv_w_t"][k][None, None, :]
    xbc = acc * jax.nn.sigmoid(acc)
    x = xbc[..., :D_INNER].reshape(B, L, NHEADS, HEAD_DIM)
    Bg = xbc[..., D_INNER:D_INNER + D_STATE]
    Cg = xbc[..., D_INNER + D_STATE:]

    A, Dp, dtb = params["adt"][0], params["adt"][1], params["adt"][2]
    dt = jax.nn.softplus(dt_raw + dtb[None, None, :])
    dA = jnp.exp(dt * A[None, None, :])

    def step(h, ins):
        x_t, b_t, c_t, dt_t, dA_t, z_t = ins
        h = h * dA_t[..., None, None] + (dt_t[..., None] * x_t)[..., None] * b_t[:, None, None, :]
        y = jnp.einsum('bhpn,bn->bhp', h, c_t, precision=hi) + Dp[None, :, None] * x_t
        y = y * (z_t * jax.nn.sigmoid(z_t))
        return h, y

    h0 = jnp.zeros((B, NHEADS, HEAD_DIM, D_STATE), jnp.float32)
    seq = (jnp.swapaxes(x, 0, 1), jnp.swapaxes(Bg, 0, 1), jnp.swapaxes(Cg, 0, 1),
           jnp.swapaxes(dt, 0, 1), jnp.swapaxes(dA, 0, 1), jnp.swapaxes(z, 0, 1))
    hT, ys = lax.scan(step, h0, seq)
    y = jnp.swapaxes(ys, 0, 1).reshape(B * L, D_INNER)

    var = jnp.mean(y * y, axis=-1, keepdims=True)
    yn = y * lax.rsqrt(var + RMS_EPS) * params["norm_w"]
    out = jnp.dot(yn, params["w_out_t"], precision=hi)
    return out, hT


# ------------------------------- deterministic parameter init ---------------------------
def init_params(key):
    ks = jax.random.split(key, 8)
    w_in = 0.02 * jax.random.normal(ks[0], (D_IN_PROJ, D_MODEL), DTYPE)   # Linear weight
    conv_w = 0.1 * jax.random.normal(ks[1], (CONV_DIM, D_CONV), DTYPE)    # conv1d weight
    conv_b = 0.01 * jax.random.normal(ks[2], (CONV_DIM,), DTYPE)          # conv_bias=True
    A = -jnp.exp(jax.random.uniform(ks[3], (NHEADS,), DTYPE, 0.0, 1.0))   # negative A
    D = 1.0 + 0.1 * jax.random.normal(ks[4], (NHEADS,), DTYPE)
    dt_bias = 0.1 * jax.random.normal(ks[5], (NHEADS,), DTYPE)
    norm_w = 1.0 + 0.01 * jax.random.normal(ks[6], (D_INNER,), DTYPE)
    w_out = 0.02 * jax.random.normal(ks[7], (D_MODEL, D_INNER), DTYPE)
    w_in_t = jnp.transpose(w_in)                    # (d_model, d_in_proj)
    return {
        "w_z_t": w_in_t[:, :D_INNER],
        "w_xbc_t": w_in_t[:, D_INNER:D_INNER + CONV_DIM],
        "w_dt_t": w_in_t[:, D_INNER + CONV_DIM:],
        "conv_w_t": jnp.transpose(conv_w),          # (d_conv, conv_dim)
        "conv_b": conv_b.reshape(1, CONV_DIM),
        "adt": jnp.stack([A, D, dt_bias]).astype(jnp.float32),   # (3, H): A | D | dt_bias
        "norm_w": norm_w.reshape(1, D_INNER),
        "w_out_t": jnp.transpose(w_out),            # (d_inner, d_model)
    }


if __name__ == "__main__":
    key = jax.random.PRNGKey(0)
    pk, xk = jax.random.split(key)
    params = init_params(pk)

    B, L = 2, 8                                     # 2 prefill seqs, len 8
    hidden_states = 0.5 * jax.random.normal(xk, (B * L, D_MODEL), DTYPE)

    out, ssm_states = mamba2_mixer_forward(hidden_states, params,
                                           num_prefill_seqs=B, prefill_len=L)
    out = jax.block_until_ready(out)
    ssm_states = jax.block_until_ready(ssm_states)

    assert out.shape == (B * L, D_MODEL)
    assert ssm_states.shape == (B, NHEADS, HEAD_DIM, D_STATE)
    assert bool(jnp.all(jnp.isfinite(out)))

    # numerical check against a pure-JAX sequential reference of the same module
    out_ref, ssm_ref = mamba2_reference(hidden_states, params,
                                        num_prefill_seqs=B, prefill_len=L)
    assert bool(jnp.allclose(out, out_ref, atol=5e-3, rtol=5e-2))
    assert bool(jnp.allclose(ssm_states, ssm_ref, atol=5e-3, rtol=5e-2))

    print("KERNEL_OK")
</pallas_src>

<mosaic_0001>
module attributes {stable_mosaic.version = 11 : i64} {
  func.func @_in_proj_kernel(%arg0: i32, %arg1: memref<16x32xf32, #tpu.memory_space<vmem>>, %arg2: memref<32x64xf32, #tpu.memory_space<vmem>>, %arg3: memref<32x96xf32, #tpu.memory_space<vmem>>, %arg4: memref<32x4xf32, #tpu.memory_space<vmem>>, %arg5: memref<16x64xf32, #tpu.memory_space<vmem>>, %arg6: memref<16x96xf32, #tpu.memory_space<vmem>>, %arg7: memref<16x4xf32, #tpu.memory_space<vmem>>) attributes {dimension_semantics = [#tpu.dimension_semantics<parallel>], iteration_bounds = array<i64: 1>, scalar_prefetch = 0 : i64, scratch_operands = 0 : i64, tpu.core_type = #tpu.core_type<tc>, window_params = [{transform_indices = @transform_0, window_bounds = array<i64: 16, 32>}, {pipeline_mode = #tpu.pipeline_mode<synchronous>, transform_indices = @transform_1, window_bounds = array<i64: 32, 64>}, {pipeline_mode = #tpu.pipeline_mode<synchronous>, transform_indices = @transform_2, window_bounds = array<i64: 32, 96>}, {pipeline_mode = #tpu.pipeline_mode<synchronous>, transform_indices = @transform_3, window_bounds = array<i64: 32, 4>}, {transform_indices = @transform_4, window_bounds = array<i64: 16, 64>}, {transform_indices = @transform_5, window_bounds = array<i64: 16, 96>}, {transform_indices = @transform_6, window_bounds = array<i64: 16, 4>}]} {
    %c0 = arith.constant 0 : index
    %c0_0 = arith.constant 0 : index
    %0 = vector.load %arg1[%c0, %c0_0] : memref<16x32xf32, #tpu.memory_space<vmem>>, vector<16x32xf32>
    %c0_1 = arith.constant 0 : index
    %c0_2 = arith.constant 0 : index
    %1 = vector.load %arg2[%c0_1, %c0_2] : memref<32x64xf32, #tpu.memory_space<vmem>>, vector<32x64xf32>
    %cst = arith.constant dense<0.000000e+00> : vector<16x64xf32>
    %2 = tpu.matmul %0, %1, %cst {dimension_numbers = #tpu.dot_dimension_numbers<[1], [0], [0], [1], [0, 0, 1, 1], [], []>} : vector<16x32xf32>, vector<32x64xf32>, vector<16x64xf32> -> vector<16x64xf32>
    %c0_3 = arith.constant 0 : index
    %c0_4 = arith.constant 0 : index
    %3 = vector.load %arg5[%c0_3, %c0_4] : memref<16x64xf32, #tpu.memory_space<vmem>>, vector<16x64xf32>
    tpu.vector_store %arg5[%c0_3, %c0_4], %2 {strides = array<i32>} : memref<16x64xf32, #tpu.memory_space<vmem>>, vector<16x64xf32>,
    %c0_5 = arith.constant 0 : index
    %c0_6 = arith.constant 0 : index
    %4 = vector.load %arg3[%c0_5, %c0_6] : memref<32x96xf32, #tpu.memory_space<vmem>>, vector<32x96xf32>
    %cst_7 = arith.constant dense<0.000000e+00> : vector<16x96xf32>
    %5 = tpu.matmul %0, %4, %cst_7 {dimension_numbers = #tpu.dot_dimension_numbers<[1], [0], [0], [1], [0, 0, 1, 1], [], []>} : vector<16x32xf32>, vector<32x96xf32>, vector<16x96xf32> -> vector<16x96xf32>
    %c0_8 = arith.constant 0 : index
    %c0_9 = arith.constant 0 : index
    %6 = vector.load %arg6[%c0_8, %c0_9] : memref<16x96xf32, #tpu.memory_space<vmem>>, vector<16x96xf32>
    tpu.vector_store %arg6[%c0_8, %c0_9], %5 {strides = array<i32>} : memref<16x96xf32, #tpu.memory_space<vmem>>, vector<16x96xf32>,
    %c0_10 = arith.constant 0 : index
    %c0_11 = arith.constant 0 : index
    %7 = vector.load %arg4[%c0_10, %c0_11] : memref<32x4xf32, #tpu.memory_space<vmem>>, vector<32x4xf32>
    %cst_12 = arith.constant dense<0.000000e+00> : vector<16x4xf32>
    %8 = tpu.matmul %0, %7, %cst_12 {dimension_numbers = #tpu.dot_dimension_numbers<[1], [0], [0], [1], [0, 0, 1, 1], [], []>} : vector<16x32xf32>, vector<32x4xf32>, vector<16x4xf32> -> vector<16x4xf32>
    %c0_13 = arith.constant 0 : index
    %c0_14 = arith.constant 0 : index
    %9 = vector.load %arg7[%c0_13, %c0_14] : memref<16x4xf32, #tpu.memory_space<vmem>>, vector<16x4xf32>
    tpu.vector_store %arg7[%c0_13, %c0_14], %8 {strides = array<i32>} : memref<16x4xf32, #tpu.memory_space<vmem>>, vector<16x4xf32>,
    return
  }
  func.func @transform_0(%arg0: i32) -> (i32, i32) {
    %c0_i32 = arith.constant 0 : i32
    %c0_i32_0 = arith.constant 0 : i32
    return %arg0, %c0_i32 : i32, i32
  }
  func.func @transform_1(%arg0: i32) -> (i32, i32) {
    %c0_i32 = arith.constant 0 : i32
    %c0_i32_0 = arith.constant 0 : i32
    %c0_i32_1 = arith.constant 0 : i32
    return %c0_i32, %c0_i32_0 : i32, i32
  }
  func.func @transform_2(%arg0: i32) -> (i32, i32) {
    %c0_i32 = arith.constant 0 : i32
    %c0_i32_0 = arith.constant 0 : i32
    %c0_i32_1 = arith.constant 0 : i32
    return %c0_i32, %c0_i32_0 : i32, i32
  }
  func.func @transform_3(%arg0: i32) -> (i32, i32) {
    %c0_i32 = arith.constant 0 : i32
    %c0_i32_0 = arith.constant 0 : i32
    %c0_i32_1 = arith.constant 0 : i32
    return %c0_i32, %c0_i32_0 : i32, i32
  }
  func.func @transform_4(%arg0: i32) -> (i32, i32) {
    %c0_i32 = arith.constant 0 : i32
    %c0_i32_0 = arith.constant 0 : i32
    return %arg0, %c0_i32 : i32, i32
  }
  func.func @transform_5(%arg0: i32) -> (i32, i32) {
    %c0_i32 = arith.constant 0 : i32
    %c0_i32_0 = arith.constant 0 : i32
    return %arg0, %c0_i32 : i32, i32
  }
  func.func @transform_6(%arg0: i32) -> (i32, i32) {
    %c0_i32 = arith.constant 0 : i32
    %c0_i32_0 = arith.constant 0 : i32
    return %arg0, %c0_i32 : i32, i32
  }
}

</mosaic_0001>

<llo_original>
// kernel: tpu_custom_call.1
$region0: #{tpu_custom_call.1}
  #allocation0 [shape = 'u32[]', space=smem, size = 0x4, offset = 0x4, fixed_abs, tag = 'smem constant byte address 0x4 - core index']
  #allocation1 [shape = 'u32[144,128]{1,0:T(1,128)}', space=vmem, size = 0x12000, scoped, tag = 'internal scratch']
  %s0 = inlined_call_operand.hbm [shape: f32[16,32], index: 0, kind: input, shape index: {}]
  %s1 = inlined_call_operand.vmem [shape: f32[32,64], index: 1, kind: input, shape index: {}]
  %s2 = inlined_call_operand.hbm [shape: f32[32,96], index: 2, kind: input, shape index: {}]
  %s3 = inlined_call_operand.vmem [shape: f32[32,4], index: 3, kind: input, shape index: {}]
  %s4 = inlined_call_operand.hbm [shape: f32[16,64], index: 4, kind: output, shape index: {0}]
  %s5 = inlined_call_operand.hbm [shape: f32[16,96], index: 5, kind: output, shape index: {1}]
  %s6 = inlined_call_operand.vmem [shape: f32[16,4], index: 6, kind: output, shape index: {2}]
  %7 = xla_tuple %s4, %s5, %s6
  %s8 = sld [smem:[#allocation0]]
  $region50: #{tpu_custom_call.1} parent=0
    _
  %s10 = ssub.s32 1, %s8
  %s11 = scalar_select 0, %s10, %s8
  $region1: #{tpu_custom_call.1} parent=0
    #allocation2 [shape = 'u8[8192]{0}', space=vmem, size = 0x2000, scoped, tag = 'input window, operand 0, single buffered']
    #allocation3 [shape = 's32[1]{0}', space=sflag, size = 0x4, scoped, tag = 'scoped memory for tpu_custom_call.1']
    #allocation4 [shape = 's32[1]{0}', space=sflag, size = 0x4, scoped, tag = 'scoped memory for tpu_custom_call.1']
    #allocation5 [shape = 'u8[16384]{0}', space=vmem, size = 0x4000, scoped, tag = 'input window, operand 2, single buffered']
    #allocation6 [shape = 's32[1]{0}', space=sflag, size = 0x4, scoped, tag = 'scoped memory for tpu_custom_call.1']
    #allocation7 [shape = 'u8[8192]{0}', space=vmem, size = 0x2000, scoped, tag = 'output window, operand 0, single buffered']
    #allocation8 [shape = 'u8[8192]{0}', space=vmem, size = 0x2000, scoped, tag = 'output window, operand 1, single buffered']
    #allocation9 [shape = 's32[1]{0}', space=sflag, size = 0x4, scoped, tag = 'scoped memory for tpu_custom_call.1']
    %12 = vsyncpa [#allocation3], 0
    %13 = vsyncpa [#allocation6], 0
    %14 = vsyncpa [#allocation4], 0
    %15 = vsyncpa [#allocation9], 0
    // Predicated region
    $region2: #{tpu_custom_call.1} parent=1 // pred_check
      _
    $region3: #{tpu_custom_call.1} parent=1 // pred_check_branch
      %17 = sbr.rel (0) target = $region5
    $region4: #{tpu_custom_call.1} parent=1 // pred_region
      %s19 = ssub.s32 256, 256
      %20 = vsyncadd [#allocation3], %s19
      %s21 = sshll.u32 [#allocation2], 4
      %s22 = int_to_ptr.vmem [resolvable:$true] %s21
      %27 = dma.hbm_to_vmem [thread:$0]  %s0, 256, %s22, [#allocation3], 128, 128, 8
    $region5: #{tpu_custom_call.1} parent=1 // pred_fallthru
      _
    // Predicated region
    $region6: #{tpu_custom_call.1} parent=1 // pred_check
      _
    $region7: #{tpu_custom_call.1} parent=1 // pred_check_branch
      %29 = sbr.rel (0) target = $region9
    $region8: #{tpu_custom_call.1} parent=1 // pred_region
      _
    $region9: #{tpu_custom_call.1} parent=1 // pred_fallthru
      _
    // Predicated region
    $region10: #{tpu_custom_call.1} parent=1 // pred_check
      _
    $region11: #{tpu_custom_call.1} parent=1 // pred_check_branch
      %31 = sbr.rel (0) target = $region13
    $region12: #{tpu_custom_call.1} parent=1 // pred_region
      %s33 = ssub.s32 512, 512
      %34 = vsyncadd [#allocation6], %s33
      %s35 = sshll.u32 [#allocation5], 4
      %s36 = int_to_ptr.vmem [resolvable:$true] %s35
      %41 = dma.hbm_to_vmem [thread:$0]  %s2, 512, %s36, [#allocation6], 128, 128, 8
    $region13: #{tpu_custom_call.1} parent=1 // pred_fallthru
      _
    // Predicated region
    $region14: #{tpu_custom_call.1} parent=1 // pred_check
      _
    $region15: #{tpu_custom_call.1} parent=1 // pred_check_branch
      %43 = sbr.rel (0) target = $region17
    $region16: #{tpu_custom_call.1} parent=1 // pred_region
      _
    $region17: #{tpu_custom_call.1} parent=1 // pred_fallthru
      _
    // Predicated region
    $region18: #{tpu_custom_call.1} parent=1 // pred_check
      _
    $region19: #{tpu_custom_call.1} parent=1 // pred_check_branch
      %45 = sbr.rel (0) target = $region21
    $region20: #{tpu_custom_call.1} parent=1 // pred_region
      %46 = dma.done [#allocation3], 256
    $region21: #{tpu_custom_call.1} parent=1 // pred_fallthru
      _
    // Predicated region
    $region22: #{tpu_custom_call.1} parent=1 // pred_check
      _
    $region23: #{tpu_custom_call.1} parent=1 // pred_check_branch
      %48 = sbr.rel (0) target = $region25
    $region24: #{tpu_custom_call.1} parent=1 // pred_region
      %49 = dma.done [#allocation6], 512
    $region25: #{tpu_custom_call.1} parent=1 // pred_fallthru
      _
    %v50 = vld [vmem:[#allocation2] sm:$0xff]
    %v51 = vld [vmem:[#allocation2 + $0x8] sm:$0xff]
    %v52 = vld [vmem:[%s1] sm:$0xff]
    %v53 = vld [vmem:[%s1 + $0x8] sm:$0xff]
    %v54 = vld [vmem:[%s1 + $0x10] sm:$0xff]
    %v55 = vld [vmem:[%s1 + $0x18] sm:$0xff]
    %vm56 = vcmask 261120
    %v58 = vsel %vm56, %v50, 0
    %v61 = vsel %vm56, %v51, 0
    %63 = vmatprep.subr.mxu0 0.0
    %64 = vmatpush1.msra.mxu0 %v52
    %65 = vmatprep.subr.mxu0 0.0
    %66 = vmatpush1.msra.mxu0 %v53
    %67 = vmatprep.subr.mxu0 0.0
    %68 = vmatpush1.msra.mxu0 %v54
    %69 = vmatprep.subr.mxu0 0.0
    %70 = vmatpush1.msra.mxu0 %v55
    %71 = vmatprep.subr.mxu0 0.0
    %72 = vmatpush1.msra.mxu0 0.0
    %73 = vmatprep.subr.mxu0 0.0
    %74 = vmatpush1.msra.mxu0 0.0
    %75 = vmatprep.subr.mxu0 0.0
    %76 = vmatpush1.msra.mxu0 0.0
    %77 = vmatprep.subr.mxu0 0.0
    %78 = vmatpush1.msra.mxu0 0.0
    %79 = vmatprep.subr.mxu0 0.0
    %80 = vmatpush1.msra.mxu0 0.0
    %81 = vmatprep.subr.mxu0 0.0
    %82 = vmatpush1.msra.mxu0 0.0
    %83 = vmatprep.subr.mxu0 0.0
    %84 = vmatpush1.msra.mxu0 0.0
    %85 = vmatprep.subr.mxu0 0.0
    %86 = vmatpush1.msra.mxu0 0.0
    %87 = vmatprep.subr.mxu0 0.0
    %88 = vmatpush1.msra.mxu0 0.0
    %89 = vmatprep.subr.mxu0 0.0
    %90 = vmatpush1.msra.mxu0 0.0
    %91 = vmatprep.subr.mxu0 0.0
    %92 = vmatpush1.msra.mxu0 0.0
    %93 = vmatprep.subr.mxu0 0.0
    %94 = vmatpush1.msra.mxu0 0.0
    %95 = vmatprep.subr.mxu0 0.0
    %96 = vmatpush1.msra.mxu0 0.0
    %97 = vmatprep.subr.mxu0 0.0
    %98 = vmatpush1.msra.mxu0 0.0
    %99 = vmatprep.subr.mxu0 0.0
    %100 = vmatpush1.msra.mxu0 0.0
    %101 = vmatprep.subr.mxu0 0.0
    %102 = vmatpush1.msra.mxu0 0.0
    %103 = vmatprep.subr.mxu0 0.0
    %104 = vmatpush1.msra.mxu0 0.0
    %105 = vmatprep.subr.mxu0 0.0
    %106 = vmatpush1.msra.mxu0 0.0
    %107 = vmatprep.subr.mxu0 0.0
    %108 = vmatpush1.msra.mxu0 0.0
    %109 = vmatprep.subr.mxu0 0.0
    %110 = vmatpush1.msra.mxu0 0.0
    %111 = vmatprep.subr.mxu0 0.0
    %112 = vmatpush1.msra.mxu0 0.0
    %113 = vmatprep.subr.mxu0 0.0
    %114 = vmatpush1.msra.mxu0 0.0
    %115 = vmatprep.subr.mxu0 0.0
    %116 = vmatpush1.msra.mxu0 0.0
    %117 = vmatprep.subr.mxu0 0.0
    %118 = vmatpush1.msra.mxu0 0.0
    %119 = vmatprep.subr.mxu0 0.0
    %120 = vmatpush1.msra.mxu0 0.0
    %121 = vmatprep.subr.mxu0 0.0
    %122 = vmatpush1.msra.mxu0 0.0
    %123 = vmatprep.subr.mxu0 0.0
    %124 = vmatpush1.msra.mxu0 0.0
    %125 = vmatprep.subr.mxu0 0.0
    %126 = vmatpush1.msra.mxu0 0.0
    %127 = vmatprep.mubr.f32.mxu0 0.0
    %128 = vmatmul.mubr.f32.gmra.mrb[0].mxu0 %v58
    %v129 = vpop.f32.mrb[0].mxu0
    %v130 = vadd.f32 0.0, %v129
    %v131 = vpop.f32.mrb[0].mxu0
    %132 = vmatprep.mubr.f32.mxu0 0.0
    %133 = vmatmul.mubr.f32.gmra.mrb[0].mxu0 %v61
    %v134 = vpop.f32.mrb[0].mxu0
    %v135 = vadd.f32 0.0, %v134
    %v136 = vpop.f32.mrb[0].mxu0
    %137 = vdwg.mxu0
    %vm138 = vcmask 523264
    %139 = vst.msk [vmem:[#allocation7] sm:$0xff] %vm138, %v130
    %140 = vst.msk [vmem:[#allocation7 + $0x8] sm:$0xff] %vm138, %v135
    %v141 = vld [vmem:[#allocation5] sm:$0xff]
    %v142 = vld [vmem:[#allocation5 + $0x8] sm:$0xff]
    %v143 = vld [vmem:[#allocation5 + $0x10] sm:$0xff]
    %v144 = vld [vmem:[#allocation5 + $0x18] sm:$0xff]
    %145 = vmatprep.subr.mxu0 0.0
    %146 = vmatpush1.msra.mxu0 %v141
    %147 = vmatprep.subr.mxu0 0.0
    %148 = vmatpush1.msra.mxu0 %v142
    %149 = vmatprep.subr.mxu0 0.0
    %150 = vmatpush1.msra.mxu0 %v143
    %151 = vmatprep.subr.mxu0 0.0
    %152 = vmatpush1.msra.mxu0 %v144
    %153 = vmatprep.subr.mxu0 0.0
    %154 = vmatpush1.msra.mxu0 0.0
    %155 = vmatprep.subr.mxu0 0.0
    %156 = vmatpush1.msra.mxu0 0.0
    %157 = vmatprep.subr.mxu0 0.0
    %158 = vmatpush1.msra.mxu0 0.0
    %159 = vmatprep.subr.mxu0 0.0
    %160 = vmatpush1.msra.mxu0 0.0
    %161 = vmatprep.subr.mxu0 0.0
    %162 = vmatpush1.msra.mxu0 0.0
    %163 = vmatprep.subr.mxu0 0.0
    %164 = vmatpush1.msra.mxu0 0.0
    %165 = vmatprep.subr.mxu0 0.0
    %166 = vmatpush1.msra.mxu0 0.0
    %167 = vmatprep.subr.mxu0 0.0
    %168 = vmatpush1.msra.mxu0 0.0
    %169 = vmatprep.subr.mxu0 0.0
    %170 = vmatpush1.msra.mxu0 0.0
    %171 = vmatprep.subr.mxu0 0.0
    %172 = vmatpush1.msra.mxu0 0.0
    %173 = vmatprep.subr.mxu0 0.0
    %174 = vmatpush1.msra.mxu0 0.0
    %175 = vmatprep.subr.mxu0 0.0
    %176 = vmatpush1.msra.mxu0 0.0
    %177 = vmatprep.subr.mxu0 0.0
    %178 = vmatpush1.msra.mxu0 0.0
    %179 = vmatprep.subr.mxu0 0.0
    %180 = vmatpush1.msra.mxu0 0.0
    %181 = vmatprep.subr.mxu0 0.0
    %182 = vmatpush1.msra.mxu0 0.0
    %183 = vmatprep.subr.mxu0 0.0
    %184 = vmatpush1.msra.mxu0 0.0
    %185 = vmatprep.subr.mxu0 0.0
    %186 = vmatpush1.msra.mxu0 0.0
    %187 = vmatprep.subr.mxu0 0.0
    %188 = vmatpush1.msra.mxu0 0.0
    %189 = vmatprep.subr.mxu0 0.0
    %190 = vmatpush1.msra.mxu0 0.0
    %191 = vmatprep.subr.mxu0 0.0
    %192 = vmatpush1.msra.mxu0 0.0
    %193 = vmatprep.subr.mxu0 0.0
    %194 = vmatpush1.msra.mxu0 0.0
    %195 = vmatprep.subr.mxu0 0.0
    %196 = vmatpush1.msra.mxu0 0.0
    %197 = vmatprep.subr.mxu0 0.0
    %198 = vmatpush1.msra.mxu0 0.0
    %199 = vmatprep.subr.mxu0 0.0
    %200 = vmatpush1.msra.mxu0 0.0
    %201 = vmatprep.subr.mxu0 0.0
    %202 = vmatpush1.msra.mxu0 0.0
    %203 = vmatprep.subr.mxu0 0.0
    %204 = vmatpush1.msra.mxu0 0.0
    %205 = vmatprep.subr.mxu0 0.0
    %206 = vmatpush1.msra.mxu0 0.0
    %207 = vmatprep.subr.mxu0 0.0
    %208 = vmatpush1.msra.mxu0 0.0
    %209 = vmatprep.mubr.f32.mxu0 0.0
    %210 = vmatmul.mubr.f32.gmra.mrb[0].mxu0 %v58
    %v211 = vpop.f32.mrb[0].mxu0
    %v212 = vadd.f32 0.0, %v211
    %v213 = vpop.f32.mrb[0].mxu0
    %214 = vmatprep.mubr.f32.mxu0 0.0
    %215 = vmatmul.mubr.f32.gmra.mrb[0].mxu0 %v61
    %v216 = vpop.f32.mrb[0].mxu0
    %v217 = vadd.f32 0.0, %v216
    %v218 = vpop.f32.mrb[0].mxu0
    %219 = vdwg.mxu0
    %vm220 = vcmask 785408
    %221 = vst.msk [vmem:[#allocation8] sm:$0xff] %vm220, %v212
    %222 = vst.msk [vmem:[#allocation8 + $0x8] sm:$0xff] %vm220, %v217
    %v223 = vld [vmem:[%s3] sm:$0xff]
    %v224 = vld [vmem:[%s3 + $0x8] sm:$0xff]
    %v225 = vld [vmem:[%s3 + $0x10] sm:$0xff]
    %v226 = vld [vmem:[%s3 + $0x18] sm:$0xff]
    %227 = vmatprep.subr.mxu0 0.0
    %228 = vmatpush1.msra.mxu0 %v223
    %229 = vmatprep.subr.mxu0 0.0
    %230 = vmatpush1.msra.mxu0 %v224
    %231 = vmatprep.subr.mxu0 0.0
    %232 = vmatpush1.msra.mxu0 %v225
    %233 = vmatprep.subr.mxu0 0.0
    %234 = vmatpush1.msra.mxu0 %v226
    %235 = vmatprep.subr.mxu0 0.0
    %236 = vmatpush1.msra.mxu0 0.0
    %237 = vmatprep.subr.mxu0 0.0
    %238 = vmatpush1.msra.mxu0 0.0
    %239 = vmatprep.subr.mxu0 0.0
    %240 = vmatpush1.msra.mxu0 0.0
    %241 = vmatprep.subr.mxu0 0.0
    %242 = vmatpush1.msra.mxu0 0.0
    %243 = vmatprep.subr.mxu0 0.0
    %244 = vmatpush1.msra.mxu0 0.0
    %245 = vmatprep.subr.mxu0 0.0
    %246 = vmatpush1.msra.mxu0 0.0
    %247 = vmatprep.subr.mxu0 0.0
    %248 = vmatpush1.msra.mxu0 0.0
    %249 = vmatprep.subr.mxu0 0.0
    %250 = vmatpush1.msra.mxu0 0.0
    %251 = vmatprep.subr.mxu0 0.0
    %252 = vmatpush1.msra.mxu0 0.0
    %253 = vmatprep.subr.mxu0 0.0
    %254 = vmatpush1.msra.mxu0 0.0
    %255 = vmatprep.subr.mxu0 0.0
    %256 = vmatpush1.msra.mxu0 0.0
    %257 = vmatprep.subr.mxu0 0.0
    %258 = vmatpush1.msra.mxu0 0.0
    %259 = vmatprep.subr.mxu0 0.0
    %260 = vmatpush1.msra.mxu0 0.0
    %261 = vmatprep.subr.mxu0 0.0
    %262 = vmatpush1.msra.mxu0 0.0
    %263 = vmatprep.subr.mxu0 0.0
    %264 = vmatpush1.msra.mxu0 0.0
    %265 = vmatprep.subr.mxu0 0.0
    %266 = vmatpush1.msra.mxu0 0.0
    %267 = vmatprep.subr.mxu0 0.0
    %268 = vmatpush1.msra.mxu0 0.0
    %269 = vmatprep.subr.mxu0 0.0
    %270 = vmatpush1.msra.mxu0 0.0
    %271 = vmatprep.subr.mxu0 0.0
    %272 = vmatpush1.msra.mxu0 0.0
    %273 = vmatprep.subr.mxu0 0.0
    %274 = vmatpush1.msra.mxu0 0.0
    %275 = vmatprep.subr.mxu0 0.0
    %276 = vmatpush1.msra.mxu0 0.0
    %277 = vmatprep.subr.mxu0 0.0
    %278 = vmatpush1.msra.mxu0 0.0
    %279 = vmatprep.subr.mxu0 0.0
    %280 = vmatpush1.msra.mxu0 0.0
    %281 = vmatprep.subr.mxu0 0.0
    %282 = vmatpush1.msra.mxu0 0.0
    %283 = vmatprep.subr.mxu0 0.0
    %284 = vmatpush1.msra.mxu0 0.0
    %285 = vmatprep.subr.mxu0 0.0
    %286 = vmatpush1.msra.mxu0 0.0
    %287 = vmatprep.subr.mxu0 0.0
    %288 = vmatpush1.msra.mxu0 0.0
    %289 = vmatprep.subr.mxu0 0.0
    %290 = vmatpush1.msra.mxu0 0.0
    %291 = vmatprep.mubr.f32.mxu0 0.0
    %292 = vmatmul.mubr.f32.gmra.mrb[0].mxu0 %v58
    %v293 = vpop.f32.mrb[0].mxu0
    %v294 = vadd.f32 0.0, %v293
    %v295 = vpop.f32.mrb[0].mxu0
    %296 = vmatprep.mubr.f32.mxu0 0.0
    %297 = vmatmul.mubr.f32.gmra.mrb[0].mxu0 %v61
    %v298 = vpop.f32.mrb[0].mxu0
    %v299 = vadd.f32 0.0, %v298
    %v300 = vpop.f32.mrb[0].mxu0
    %301 = vdwg.mxu0
    %vm302 = vcmask 31744
    %303 = vst.msk [vmem:[%s6] sm:$0xff] %vm302, %v294
    %304 = vst.msk [vmem:[%s6 + $0x8] sm:$0xff] %vm302, %v299
    // Predicated region
    $region26: #{tpu_custom_call.1} parent=1 // pred_check
      _
    $region27: #{tpu_custom_call.1} parent=1 // pred_check_branch
      %306 = sbr.rel (0) target = $region29
    $region28: #{tpu_custom_call.1} parent=1 // pred_region
      %s308 = ssub.s32 256, 256
      %309 = vsyncadd [#allocation4], %s308
      %s310 = sshll.u32 [#allocation7], 4
      %s311 = int_to_ptr.vmem [resolvable:$true] %s310
      %316 = dma.vmem_to_hbm [thread:$0]  %s311, 256, %s4, [#allocation4], 128, 128, 8
    $region29: #{tpu_custom_call.1} parent=1 // pred_fallthru
      _
    // Predicated region
    $region30: #{tpu_custom_call.1} parent=1 // pred_check
      _
    $region31: #{tpu_custom_call.1} parent=1 // pred_check_branch
      %318 = sbr.rel (0) target = $region33
    $region32: #{tpu_custom_call.1} parent=1 // pred_region
      %s320 = ssub.s32 256, 256
      %321 = vsyncadd [#allocation9], %s320
      %s322 = sshll.u32 [#allocation8], 4
      %s323 = int_to_ptr.vmem [resolvable:$true] %s322
      %328 = dma.vmem_to_hbm [thread:$0]  %s323, 256, %s5, [#allocation9], 128, 128, 8
    $region33: #{tpu_custom_call.1} parent=1 // pred_fallthru
      _
    // Predicated region
    $region34: #{tpu_custom_call.1} parent=1 // pred_check
      _
    $region35: #{tpu_custom_call.1} parent=1 // pred_check_branch
      %330 = sbr.rel (0) target = $region37
    $region36: #{tpu_custom_call.1} parent=1 // pred_region
      _
    $region37: #{tpu_custom_call.1} parent=1 // pred_fallthru
      _
    // Predicated region
    $region38: #{tpu_custom_call.1} parent=1 // pred_check
      _
    $region39: #{tpu_custom_call.1} parent=1 // pred_check_branch
      %332 = sbr.rel (0) target = $region41
    $region40: #{tpu_custom_call.1} parent=1 // pred_region
      %333 = dma.done [#allocation4], 256
    $region41: #{tpu_custom_call.1} parent=1 // pred_fallthru
      _
    // Predicated region
    $region42: #{tpu_custom_call.1} parent=1 // pred_check
      _
    $region43: #{tpu_custom_call.1} parent=1 // pred_check_branch
      %335 = sbr.rel (0) target = $region45
    $region44: #{tpu_custom_call.1} parent=1 // pred_region
      %336 = dma.done [#allocation9], 256
    $region45: #{tpu_custom_call.1} parent=1 // pred_fallthru
      _
    // Predicated region
    $region46: #{tpu_custom_call.1} parent=1 // pred_check
      _
    $region47: #{tpu_custom_call.1} parent=1 // pred_check_branch
      %338 = sbr.rel (0) target = $region49
    $region48: #{tpu_custom_call.1} parent=1 // pred_region
      _
    $region49: #{tpu_custom_call.1} parent=1 // pred_fallthru
      _
    %339 = vsyncpa [#allocation3], 1
    %340 = vsyncpa [#allocation6], 1
    %341 = vsyncpa [#allocation4], 1
    %342 = vsyncpa [#allocation9], 1

</llo_original>
